<compile_context>
chip_gen: v7x
topology: tpu7x:2x2x1
jax: 0.10.0
libtpu: 0.0.40
codegen_flags: <defaults>
</compile_context>

<pallas_src>
import functools

import jax
import jax.numpy as jnp
from jax import lax
from jax.experimental import pallas as pl
from jax.experimental.pallas import tpu as pltpu

block_size = 64
n_embd = 192
dropout = 0.2   # nn.Dropout rate; identity in eval mode (see TODO in kernel)

_LANES = 128
_SUBLANES = 8
_VMEM_BUDGET_BYTES = 36 * 2**20   # conservative per-step tile budget (fits v7x 64 MiB)
_VMEM_LIMIT_BYTES = 48 * 2**20    # scoped VMEM limit (> v5e's 16 MiB default)


def head_kernel(x_ref, wt_ref, o_ref):
    # x_ref : (bb, Tp, C)   f32 batch-tile of the input
    # wt_ref: (C, Hp)       bf16 shared key/query/value weight (transposed, zero-padded)
    # o_ref : (bb, Tp, Hp)  f32 output batch-tile (pad columns are exactly zero)
    bb, T, C = x_ref.shape
    Hp = wt_ref.shape[1]

    # Shared projection: ONE flattened (bb*T, C) @ (C, Hp) MXU matmul.
    # Reshape while still f32 (T is a multiple of 8 -> free relayout), then
    # cast the MXU operand to bf16; accumulate in f32.
    x2d = x_ref[...].reshape(bb * T, C).astype(jnp.bfloat16)
    kqv = jnp.dot(x2d, wt_ref[...],
                  preferred_element_type=jnp.float32).reshape(bb, T, Hp)

    # k == q == v (aliased Linear, no bias). Fold the C**-0.5 scale (C = n_embd,
    # faithful to the PyTorch module) into the small (T, Hp) q operand.
    kv = kqv.astype(jnp.bfloat16)
    q = (kqv * (C ** -0.5)).astype(jnp.bfloat16)

    # Attention scores: batched contraction on the last dims (no transpose).
    scores = jnp.einsum("bth,bsh->bts", q, kv,
                        preferred_element_type=jnp.float32)        # (bb, T, T) f32

    # Causal mask. -inf is safe: the diagonal is always unmasked.
    row = lax.broadcasted_iota(jnp.int32, (T, T), 0)
    col = lax.broadcasted_iota(jnp.int32, (T, T), 1)
    scores = jnp.where(col <= row, scores, -jnp.inf)

    # Numerically-stable softmax in f32; approx reciprocal uses the EUP slot.
    scores = scores - jnp.max(scores, axis=-1, keepdims=True)
    p = jnp.exp(scores)
    p = p * pl.reciprocal(jnp.sum(p, axis=-1, keepdims=True), approx=True)

    # TODO(synk): nn.Dropout(0.2) is stochastic; eval-mode (identity) is used here.

    # Weighted aggregation of values; lane-dense (bb, T, 128) f32 store.
    o_ref[...] = jnp.einsum("bts,bsh->bth", p.astype(jnp.bfloat16), kv,
                            preferred_element_type=jnp.float32
                            ).astype(o_ref.dtype)


def _pick_block_b(B, Tp, C, Hp):
    """Largest batch tile that (a) targets ~4K flattened rows per step,
    (b) fits the VMEM budget with double buffering, and (c) leaves >= 2 grid
    steps so the v7x megacore can shard the parallel batch axis."""
    # Bytes per batch element per pipeline step: double-buffered f32 x tile +
    # double-buffered f32 out tile + live intermediates (kqv f32, bf16 kv/q
    # copies, f32 scores + probabilities).
    per_b = Tp * (2 * C * 4 + 2 * Hp * 4 + Hp * (4 + 2 + 2) + 2 * Tp * 4)
    bb = max(1, min(B,
                    _VMEM_BUDGET_BYTES // per_b,
                    max(1, 4096 // Tp)))
    if B > 1:
        bb = min(bb, pl.cdiv(B, 2))   # keep >= 2 grid steps (v7x: 2 TensorCores)
    return bb


@functools.partial(jax.jit, static_argnames=("block_b",))
def head_forward(x, w, *, block_b=None):
    """x: (B, T, C) float32, w: (H, C) float32 (nn.Linear layout) -> (B, T, H)."""
    B, T, C = x.shape
    H = w.shape[0]

    Hp = ((H + _LANES - 1) // _LANES) * _LANES          # pad head dim to 128 lanes
    Tp = ((T + _SUBLANES - 1) // _SUBLANES) * _SUBLANES  # pad seq to sublane multiple

    # One-time XLA transpose + zero-pad of the shared weight: (H, C) -> (C, Hp),
    # cast once to bf16 (MXU operand; accumulation stays f32 in-kernel).
    w_t = jnp.pad(jnp.transpose(w), ((0, 0), (0, Hp - H))).astype(jnp.bfloat16)

    # Zero-pad T (padded key columns are causally masked for every real query
    # row, so they cannot affect real outputs; padded query rows are sliced off).
    if Tp != T:
        x = jnp.pad(x, ((0, 0), (0, Tp - T), (0, 0)))

    bb = block_b if block_b is not None else _pick_block_b(B, Tp, C, Hp)
    bb = max(1, min(bb, B))
    grid = (pl.cdiv(B, bb),)

    flops = 2 * B * Tp * C * Hp + 4 * B * Tp * Tp * Hp
    bytes_accessed = B * Tp * C * 4 + C * Hp * 2 + B * Tp * Hp * 4

    out = pl.pallas_call(
        head_kernel,
        out_shape=jax.ShapeDtypeStruct((B, Tp, Hp), jnp.float32),
        grid_spec=pltpu.PrefetchScalarGridSpec(
            num_scalar_prefetch=0,
            grid=grid,
            in_specs=[
                pl.BlockSpec((bb, Tp, C), lambda b: (b, 0, 0)),
                pl.BlockSpec((C, Hp), lambda b: (0, 0)),
            ],
            out_specs=pl.BlockSpec((bb, Tp, Hp), lambda b: (b, 0, 0)),
        ),
        compiler_params=pltpu.CompilerParams(
            dimension_semantics=("parallel",),
            vmem_limit_bytes=_VMEM_LIMIT_BYTES,
        ),
        cost_estimate=pl.CostEstimate(
            flops=flops,
            transcendentals=B * Tp * Tp,
            bytes_accessed=bytes_accessed,
        ),
    )(x, w_t)

    # Strip the sequence / head-dim padding (pad output columns are exactly 0).
    return out[:, :T, :H]


def head_reference(x, w):
    """Plain-JAX f32 reference of the same forward (eval mode)."""
    B, T, C = x.shape
    kqv = jnp.einsum("btc,hc->bth", x, w)
    scores = jnp.einsum("bth,bsh->bts", kqv, kqv) * (C ** -0.5)
    mask = jnp.tril(jnp.ones((T, T), dtype=bool))
    scores = jnp.where(mask, scores, -jnp.inf)
    p = jax.nn.softmax(scores, axis=-1)
    return jnp.einsum("bts,bsh->bth", p, kqv)


if __name__ == "__main__":
    head_size = 32
    B, T = 2, 8                        # T <= block_size (= 64)

    key = jax.random.PRNGKey(0)
    kx, kw = jax.random.split(key)
    x = jax.random.normal(kx, (B, T, n_embd), dtype=jnp.float32)
    # deterministic init mimicking nn.Linear(n_embd, head_size) weight shape (H, C)
    w = jax.random.normal(kw, (head_size, n_embd), dtype=jnp.float32) * (n_embd ** -0.5)

    out = jax.block_until_ready(head_forward(x, w))
    ref = head_reference(x, w)

    assert out.shape == (B, T, head_size)
    # Tolerance covers bf16 MXU operands (with f32 accumulation) and the approx
    # (EUP) softmax reciprocal; the kernel logic is otherwise exact vs. the f32
    # reference (mask, shared-weight aliasing, n_embd**-0.5 scale).
    max_err = float(jnp.max(jnp.abs(out - ref)))
    assert jnp.allclose(out, ref, atol=5e-2, rtol=5e-2), max_err

    print("KERNEL_OK")
</pallas_src>

<mosaic_0001>
module attributes {stable_mosaic.version = 11 : i64} {
  func.func @head_kernel(%arg0: i32, %arg1: memref<1x8x192xf32, #tpu.memory_space<vmem>>, %arg2: memref<192x128xbf16, #tpu.memory_space<vmem>>, %arg3: memref<1x8x128xf32, #tpu.memory_space<vmem>>) attributes {dimension_semantics = [#tpu.dimension_semantics<parallel>], iteration_bounds = array<i64: 2>, scalar_prefetch = 0 : i64, scratch_operands = 0 : i64, tpu.core_type = #tpu.core_type<tc>, window_params = [{transform_indices = @transform_0, window_bounds = array<i64: 1, 8, 192>}, {pipeline_mode = #tpu.pipeline_mode<synchronous>, transform_indices = @transform_1, window_bounds = array<i64: 192, 128>}, {transform_indices = @transform_2, window_bounds = array<i64: 1, 8, 128>}]} {
    %c0 = arith.constant 0 : index
    %c0_0 = arith.constant 0 : index
    %c0_1 = arith.constant 0 : index
    %0 = vector.load %arg1[%c0, %c0_0, %c0_1] : memref<1x8x192xf32, #tpu.memory_space<vmem>>, vector<1x8x192xf32>
    %1 = vector.shape_cast %0 : vector<1x8x192xf32> to vector<8x192xf32>
    %2 = arith.truncf %1 : vector<8x192xf32> to vector<8x192xbf16>
    %c0_2 = arith.constant 0 : index
    %c0_3 = arith.constant 0 : index
    %3 = vector.load %arg2[%c0_2, %c0_3] : memref<192x128xbf16, #tpu.memory_space<vmem>>, vector<192x128xbf16>
    %cst = arith.constant dense<0.000000e+00> : vector<8x128xf32>
    %4 = tpu.matmul %2, %3, %cst {dimension_numbers = #tpu.dot_dimension_numbers<[1], [0], [0], [1], [0, 0, 1, 1], [], []>} : vector<8x192xbf16>, vector<192x128xbf16>, vector<8x128xf32> -> vector<8x128xf32>
    %5 = vector.shape_cast %4 : vector<8x128xf32> to vector<1x8x128xf32>
    %6 = arith.truncf %5 : vector<1x8x128xf32> to vector<1x8x128xbf16>
    %cst_4 = arith.constant 0.0721687824 : f32
    %7 = vector.broadcast %cst_4 : f32 to vector<1x8x128xf32>
    %8 = arith.mulf %5, %7 : vector<1x8x128xf32>
    %9 = arith.truncf %8 : vector<1x8x128xf32> to vector<1x8x128xbf16>
    "tpu.trace_start"() <{level = 10 : i32, message = "bth,bsh->bts"}> : () -> ()
    %cst_5 = arith.constant dense<0.000000e+00> : vector<1x8x8xf32>
    %10 = tpu.matmul %9, %6, %cst_5 {dimension_numbers = #tpu.dot_dimension_numbers<[2], [2], [1], [1], [0, 0, 0, 1, 1, 1], [0], [0]>} : vector<1x8x128xbf16>, vector<1x8x128xbf16>, vector<1x8x8xf32> -> vector<1x8x8xf32>
    "tpu.trace_stop"() : () -> ()
    %11 = tpu.iota {dimensions = array<i32: 0>} : vector<8x8xi32>
    %12 = tpu.iota {dimensions = array<i32: 1>} : vector<8x8xi32>
    %13 = arith.cmpi sle, %12, %11 : vector<8x8xi32>
    %cst_6 = arith.constant 0xFF800000 : f32
    %14 = vector.shape_cast %13 : vector<8x8xi1> to vector<1x8x8xi1>
    %15 = vector.broadcast %cst_6 : f32 to vector<1x8x8xf32>
    %16 = arith.select %14, %10, %15 : vector<1x8x8xi1>, vector<1x8x8xf32>
    %cst_7 = arith.constant dense<0xFF800000> : vector<1x8xf32>
    %17 = vector.multi_reduction <maximumf>, %16, %cst_7 [2] : vector<1x8x8xf32> to vector<1x8xf32>
    %18 = vector.shape_cast %17 : vector<1x8xf32> to vector<1x8x1xf32>
    %19 = vector.broadcast %18 : vector<1x8x1xf32> to vector<1x8x8xf32>
    %20 = arith.subf %16, %19 : vector<1x8x8xf32>
    %21 = math.exp %20 : vector<1x8x8xf32>
    %cst_8 = arith.constant dense<0.000000e+00> : vector<1x8xf32>
    %22 = vector.multi_reduction <add>, %21, %cst_8 [2] : vector<1x8x8xf32> to vector<1x8xf32>
    %23 = vector.shape_cast %22 : vector<1x8xf32> to vector<1x8x1xf32>
    %24 = tpu.reciprocal %23 {approx = true} : vector<1x8x1xf32> -> vector<1x8x1xf32>
    %25 = vector.broadcast %24 : vector<1x8x1xf32> to vector<1x8x8xf32>
    %26 = arith.mulf %21, %25 : vector<1x8x8xf32>
    %27 = arith.truncf %26 : vector<1x8x8xf32> to vector<1x8x8xbf16>
    "tpu.trace_start"() <{level = 10 : i32, message = "bts,bsh->bth"}> : () -> ()
    %cst_9 = arith.constant dense<0.000000e+00> : vector<1x8x128xf32>
    %28 = tpu.matmul %27, %6, %cst_9 {dimension_numbers = #tpu.dot_dimension_numbers<[2], [1], [1], [2], [0, 0, 0, 1, 1, 2], [0], [0]>} : vector<1x8x8xbf16>, vector<1x8x128xbf16>, vector<1x8x128xf32> -> vector<1x8x128xf32>
    "tpu.trace_stop"() : () -> ()
    %c0_10 = arith.constant 0 : index
    %c0_11 = arith.constant 0 : index
    %c0_12 = arith.constant 0 : index
    %29 = vector.load %arg3[%c0_10, %c0_11, %c0_12] : memref<1x8x128xf32, #tpu.memory_space<vmem>>, vector<1x8x128xf32>
    tpu.vector_store %arg3[%c0_10, %c0_11, %c0_12], %28 {strides = array<i32>} : memref<1x8x128xf32, #tpu.memory_space<vmem>>, vector<1x8x128xf32>,
    return
  }
  func.func @transform_0(%arg0: i32) -> (i32, i32, i32) {
    %c0_i32 = arith.constant 0 : i32
    %c0_i32_0 = arith.constant 0 : i32
    %c0_i32_1 = arith.constant 0 : i32
    return %arg0, %c0_i32, %c0_i32_0 : i32, i32, i32
  }
  func.func @transform_1(%arg0: i32) -> (i32, i32) {
    %c0_i32 = arith.constant 0 : i32
    %c0_i32_0 = arith.constant 0 : i32
    %c0_i32_1 = arith.constant 0 : i32
    return %c0_i32, %c0_i32_0 : i32, i32
  }
  func.func @transform_2(%arg0: i32) -> (i32, i32, i32) {
    %c0_i32 = arith.constant 0 : i32
    %c0_i32_0 = arith.constant 0 : i32
    %c0_i32_1 = arith.constant 0 : i32
    return %arg0, %c0_i32, %c0_i32_0 : i32, i32, i32
  }
}

</mosaic_0001>

<llo_original>
// kernel: head_forward.1
$region0: #{head_forward.1}
  #allocation0 [shape = 'u32[]', space=smem, size = 0x4, offset = 0x4, fixed_abs, tag = 'smem constant byte address 0x4 - core index']
  #allocation1 [shape = 'u32[144,128]{1,0:T(1,128)}', space=vmem, size = 0x12000, scoped, tag = 'internal scratch']
  %s0 = inlined_call_operand.vmem [shape: f32[2,8,192], index: 0, kind: input, shape index: {}]
  %s1 = inlined_call_operand.vmem [shape: bf16[192,128], index: 1, kind: input, shape index: {}]
  %s2 = inlined_call_operand.hbm [shape: f32[2,8,128], index: 2, kind: output, shape index: {}]
  %s3 = sld [smem:[#allocation0]]
  $region41: #{head_forward.1} parent=0
    _
  %s5 = ssub.s32 1, %s3
  %s6 = scalar_select 0, %s5, %s3
  $region1: #{head_forward.1} parent=0
    #allocation2 [shape = 'u8[8192]{0}', space=vmem, size = 0x2000, scoped, tag = 'output window, operand 0']
    #allocation3 [shape = 's32[2]{0}', space=sflag, size = 0x8, scoped, tag = 'scoped memory for head_forward.1']
    %7 = vsyncpa [#allocation3], 0
    %s8 = scalar_lea.sflag [#allocation3], 1
    %9 = vsyncpa %s8, 0
    loop: start=0, step=1, limit=4
    $region2: #{head_forward.1} parent=1 // loop_pre_header
      _
    $region3: #{head_forward.1} parent=1 // loop_header
      %s11 = sphi 0, %s15
      %p12 = scmp.ge.s32.totalorder %s11, 4
      %s21 = sphi 0, %s23
      %s24 = sphi 0, %s21
      %s25 = sphi 0, %s24
      %s41 = sphi 0, %s25
      %s45 = sphi 0, %s45
      %s47 = sphi 0, %s45
      %s48 = sphi 0, %s47
      %s62 = sphi 0, %s48
      %s68 = sphi 0, %s70
      %s71 = sphi 0, %s68
      %s72 = sphi 0, %s71
      %s88 = sphi 0, %s72
    $region4: #{head_forward.1} parent=1 // loop_header_branch
      %14 = sbr.rel (%p12) target = $region8
    $region5: #{head_forward.1} parent=1 // loop_body
      %s16 = ssub.s32 %s11, 1
      %s17 = ssub.s32 %s11, 2
      %s18 = sadd.s32 %s11, 1
      %s19 = ssub.s32 %s11, %s18
      %p20 = scmp.eq.s32.totalorder %s19, 0
      %s22 = sadd.s32 %s21, 1
      %s23 = scalar_select %p20, %s21, %s22
      %p26 = pneg %p20
      %p27 = scmp.eq.s32.totalorder %s11, 1
      %p28 = por %p26, %p27
      %p29 = scmp.ne.s32.totalorder %s21, %s24
      %p30 = scmp.eq.s32.totalorder %s11, 0
      %p31 = por %p29, %p30
      %p32 = scmp.ne.s32.totalorder %s21, %s24
      %p33 = scmp.eq.s32.totalorder %s16, 1
      %p34 = por %p32, %p33
      %p35 = scmp.ne.s32.totalorder %s24, %s25
      %p36 = scmp.eq.s32.totalorder %s16, 0
      %p37 = por %p35, %p36
      %p38 = scmp.ne.s32.totalorder %s24, %s25
      %p39 = scmp.eq.s32.totalorder %s17, 1
      %p40 = por %p38, %p39
      %p42 = scmp.ne.s32.totalorder %s25, %s41
      %p43 = scmp.eq.s32.totalorder %s17, 0
      %p44 = por %p42, %p43
      %s46 = sadd.s32 %s45, 1
      %p49 = scmp.eq.s32.totalorder %s11, 1
      %p50 = scmp.ne.s32.totalorder %s45, %s47
      %p51 = scmp.eq.s32.totalorder %s11, 0
      %p52 = por %p50, %p51
      %p53 = scmp.ne.s32.totalorder %s45, %s47
      %p54 = scmp.eq.s32.totalorder %s16, 1
      %p55 = por %p53, %p54
      %p56 = scmp.ne.s32.totalorder %s47, %s48
      %p57 = scmp.eq.s32.totalorder %s16, 0
      %p58 = por %p56, %p57
      %p59 = scmp.ne.s32.totalorder %s47, %s48
      %p60 = scmp.eq.s32.totalorder %s17, 1
      %p61 = por %p59, %p60
      %p63 = scmp.ne.s32.totalorder %s48, %s62
      %p64 = scmp.eq.s32.totalorder %s17, 0
      %p65 = por %p63, %p64
      %s66 = ssub.s32 %s11, %s18
      %p67 = scmp.eq.s32.totalorder %s66, 0
      %s69 = sadd.s32 %s68, 1
      %s70 = scalar_select %p67, %s68, %s69
      %p73 = pneg %p67
      %p74 = scmp.eq.s32.totalorder %s11, 1
      %p75 = por %p73, %p74
      %p76 = scmp.ne.s32.totalorder %s68, %s71
      %p77 = scmp.eq.s32.totalorder %s11, 0
      %p78 = por %p76, %p77
      %p79 = scmp.ne.s32.totalorder %s68, %s71
      %p80 = scmp.eq.s32.totalorder %s16, 1
      %p81 = por %p79, %p80
      %p82 = scmp.ne.s32.totalorder %s71, %s72
      %p83 = scmp.eq.s32.totalorder %s16, 0
      %p84 = por %p82, %p83
      %p85 = scmp.ne.s32.totalorder %s71, %s72
      %p86 = scmp.eq.s32.totalorder %s17, 1
      %p87 = por %p85, %p86
      %p89 = scmp.ne.s32.totalorder %s72, %s88
      %p90 = scmp.eq.s32.totalorder %s17, 0
      %p91 = por %p89, %p90
      %p92 = scmp.le.s32.totalorder 1, %s11
      %p93 = scmp.lt.s32.totalorder %s11, 3
      %p94 = pnand %p92, %p93
      %p95 = pneg %p94
      // Predicated region
      $region9: #{head_forward.1} parent=5 // pred_check
        _
      $region10: #{head_forward.1} parent=5 // pred_check_branch
        %97 = sbr.rel (%p94) target = $region12
      $region11: #{head_forward.1} parent=5 // pred_region
        %s98 = ssub.s32 %s11, 1
        // Predicated region
        $region13: #{head_forward.1} parent=11 // pred_check
          %p99 = pneg %p58
        $region14: #{head_forward.1} parent=11 // pred_check_branch
          %101 = sbr.rel (%p99) target = $region16
        $region15: #{head_forward.1} parent=11 // pred_region
          _
        $region16: #{head_forward.1} parent=11 // pred_fallthru
          _
      $region12: #{head_forward.1} parent=5 // pred_fallthru
        _
      %p102 = scmp.lt.s32.totalorder %s11, 2
      // Predicated region
      $region17: #{head_forward.1} parent=5 // pred_check
        %p103 = pneg %p102
      $region18: #{head_forward.1} parent=5 // pred_check_branch
        %105 = sbr.rel (%p103) target = $region20
      $region19: #{head_forward.1} parent=5 // pred_region
        // Predicated region
        $region21: #{head_forward.1} parent=19 // pred_check
          %p106 = pneg %p31
        $region22: #{head_forward.1} parent=19 // pred_check_branch
          %108 = sbr.rel (%p106) target = $region24
        $region23: #{head_forward.1} parent=19 // pred_region
          %p109 = scmp.lt.s32.totalorder %s11, 1
          %s110 = scalar_select %p109, %s11, 1
          %s111 = smul.addr %s110, 2
          %s112 = smul.addr %s111, 8
          %s113 = scalar_lea.vmem %s0, %s112
        $region24: #{head_forward.1} parent=19 // pred_fallthru
          _
      $region20: #{head_forward.1} parent=5 // pred_fallthru
        _
      %p114 = scmp.le.s32.totalorder 1, %s11
      %p115 = scmp.lt.s32.totalorder %s11, 3
      %p116 = pnand %p114, %p115
      %p117 = pneg %p116
      // Predicated region
      $region25: #{head_forward.1} parent=5 // pred_check
        _
      $region26: #{head_forward.1} parent=5 // pred_check_branch
        %119 = sbr.rel (%p116) target = $region28
      $region27: #{head_forward.1} parent=5 // pred_region
        %s120 = ssub.s32 %s11, 1
        %p121 = scmp.lt.s32.totalorder %s16, 1
        %s122 = scalar_select %p121, %s16, 1
        %s123 = smul.addr %s122, 2
        %s124 = smul.addr %s123, 8
        %s125 = scalar_lea.vmem %s0, %s124
        %p126 = pneg %p37
        %p127 = pneg %p34
        %p128 = pneg %p58
        %p129 = pneg %p55
        %p130 = pneg %p84
        %p131 = pneg %p81
        %s132 = sand.u32 %s71, 1
        %s133 = scalar_lea.sflag [#allocation3], %s132
        %s134 = sand.u32 %s71, 1
        %s135 = smul.addr %s134, 8
        %s136 = scalar_lea.vmem [#allocation2], %s135
        %p137 = scmp.lt.s32.totalorder %s16, 1
        %s138 = scalar_select %p137, %s16, 1
        %s139 = smul.addr %s138, 2
        %s140 = smul.addr %s139, 8
        %s141 = scalar_lea.vmem %s0, %s140
        %v143 = vld [vmem:[%s141] sm:$0xff]
        %v144 = vld [vmem:[%s141 + $0x8] sm:$0xff]
        %v145 = vpack.c.bf16 %v143, %v143
        %v146 = vpack.c.bf16 %v144, %v144
        %v147 = vld [vmem:[%s1] sm:$0xf]
        %v148 = vld [vmem:[%s1 + $0x4] sm:$0xf]
        %v149 = vld [vmem:[%s1 + $0x8] sm:$0xf]
        %v150 = vld [vmem:[%s1 + $0xc] sm:$0xf]
        %v151 = vld [vmem:[%s1 + $0x10] sm:$0xf]
        %v152 = vld [vmem:[%s1 + $0x14] sm:$0xf]
        %v153 = vld [vmem:[%s1 + $0x18] sm:$0xf]
        %v154 = vld [vmem:[%s1 + $0x1c] sm:$0xf]
        %v155 = vld [vmem:[%s1 + $0x20] sm:$0xf]
        %v156 = vld [vmem:[%s1 + $0x24] sm:$0xf]
        %v157 = vld [vmem:[%s1 + $0x28] sm:$0xf]
        %v158 = vld [vmem:[%s1 + $0x2c] sm:$0xf]
        %v159 = vld [vmem:[%s1 + $0x30] sm:$0xf]
        %v160 = vld [vmem:[%s1 + $0x34] sm:$0xf]
        %v161 = vld [vmem:[%s1 + $0x38] sm:$0xf]
        %v162 = vld [vmem:[%s1 + $0x3c] sm:$0xf]
        %v163 = vld [vmem:[%s1 + $0x40] sm:$0xf]
        %v164 = vld [vmem:[%s1 + $0x44] sm:$0xf]
        %v165 = vld [vmem:[%s1 + $0x48] sm:$0xf]
        %v166 = vld [vmem:[%s1 + $0x4c] sm:$0xf]
        %v167 = vld [vmem:[%s1 + $0x50] sm:$0xf]
        %v168 = vld [vmem:[%s1 + $0x54] sm:$0xf]
        %v169 = vld [vmem:[%s1 + $0x58] sm:$0xf]
        %v170 = vld [vmem:[%s1 + $0x5c] sm:$0xf]
        %v195 = vunpack.c.l.b16 %v147
        %v196 = vunpack.c.l.b16 %v148
        %v197 = vunpack.c.l.b16 %v149
        %v198 = vunpack.c.l.b16 %v150
        %v199 = vunpack.c.l.b16 %v151
        %v200 = vunpack.c.l.b16 %v152
        %v201 = vunpack.c.l.b16 %v153
        %v202 = vunpack.c.l.b16 %v154
        %v203 = vunpack.c.l.b16 %v155
        %v204 = vunpack.c.l.b16 %v156
        %v205 = vunpack.c.l.b16 %v157
        %v206 = vunpack.c.l.b16 %v158
        %v207 = vunpack.c.l.b16 %v159
        %v208 = vunpack.c.l.b16 %v160
        %v209 = vunpack.c.l.b16 %v161
        %v210 = vunpack.c.l.b16 %v162
        %v211 = vunpack.c.l.b16 %v163
        %v212 = vunpack.c.l.b16 %v164
        %v213 = vunpack.c.l.b16 %v165
        %v214 = vunpack.c.l.b16 %v166
        %v215 = vunpack.c.l.b16 %v167
        %v216 = vunpack.c.l.b16 %v168
        %v217 = vunpack.c.l.b16 %v169
        %v218 = vunpack.c.l.b16 %v170
        %v219 = vpack.c.b16 %v196, %v195
        %v220 = vpack.c.b16 %v198, %v197
        %v221 = vpack.c.b16 %v200, %v199
        %v222 = vpack.c.b16 %v202, %v201
        %v223 = vpack.c.b16 %v204, %v203
        %v224 = vpack.c.b16 %v206, %v205
        %v225 = vpack.c.b16 %v208, %v207
        %v226 = vpack.c.b16 %v210, %v209
        %v227 = vpack.c.b16 %v212, %v211
        %v228 = vpack.c.b16 %v214, %v213
        %v229 = vpack.c.b16 %v216, %v215
        %v230 = vpack.c.b16 %v218, %v217
        %vm243 = vcmask 523264
        %v245 = vsel %vm243, %v146, 0
        %247 = vmatprep.subr.bf16.mxu0 0
        %248 = vmatpush1.bf16.msra.mxu0 %v219
        %249 = vmatprep.subr.bf16.mxu0 0
        %250 = vmatpush1.bf16.msra.mxu0 %v220
        %251 = vmatprep.subr.bf16.mxu0 0
        %252 = vmatpush1.bf16.msra.mxu0 %v221
        %253 = vmatprep.subr.bf16.mxu0 0
        %254 = vmatpush1.bf16.msra.mxu0 %v222
        %255 = vmatprep.subr.bf16.mxu0 0
        %256 = vmatpush1.bf16.msra.mxu0 %v223
        %257 = vmatprep.subr.bf16.mxu0 0
        %258 = vmatpush1.bf16.msra.mxu0 %v224
        %259 = vmatprep.subr.bf16.mxu0 0
        %260 = vmatpush1.bf16.msra.mxu0 %v225
        %261 = vmatprep.subr.bf16.mxu0 0
        %262 = vmatpush1.bf16.msra.mxu0 %v226
        %263 = vmatprep.subr.bf16.mxu0 0
        %264 = vmatpush1.bf16.msra.mxu0 %v227
        %265 = vmatprep.subr.bf16.mxu0 0
        %266 = vmatpush1.bf16.msra.mxu0 %v228
        %267 = vmatprep.subr.bf16.mxu0 0
        %268 = vmatpush1.bf16.msra.mxu0 %v229
        %269 = vmatprep.subr.bf16.mxu0 0
        %270 = vmatpush1.bf16.msra.mxu0 %v230
        %271 = vmatprep.subr.bf16.mxu0 0
        %272 = vmatpush1.bf16.msra.mxu0 0
        %273 = vmatprep.subr.bf16.mxu0 0
        %274 = vmatpush1.bf16.msra.mxu0 0
        %275 = vmatprep.subr.bf16.mxu0 0
        %276 = vmatpush1.bf16.msra.mxu0 0
        %277 = vmatprep.subr.bf16.mxu0 0
        %278 = vmatpush1.bf16.msra.mxu0 0
        %279 = vmatprep.mubr.bf16.mxu0 %v245
        %280 = vmatmul.mubr.bf16.gmra.mrb[0].mxu0 %v145
        %v281 = vpop.f32.mrb[0].mxu0
        %v282 = vadd.f32 0.0, %v281
        %v283 = vpop.f32.mrb[0].mxu0
        %v284 = vpop.f32.mrb[0].mxu0
        %v285 = vpop.f32.mrb[0].mxu0
        %286 = vdwg.mxu0
        %v287 = vpack.c.bf16 %v282, %v282
        %v288 = vmul.f32 %v282, 0.07216878
        %v289 = vpack.c.bf16 %v288, %v288
        %290 = vmatprep.subr.bf16.mxu0 0
        %291 = vmatpush1.bf16.xpose.msra.mxu0 %v287
        %292 = vmatprep.subr.bf16.mxu0 0
        %293 = vmatpush1.bf16.xpose.msra.mxu0 0
        %294 = vmatprep.subr.bf16.mxu0 0
        %295 = vmatpush1.bf16.xpose.msra.mxu0 0
        %296 = vmatprep.subr.bf16.mxu0 0
        %297 = vmatpush1.bf16.xpose.msra.mxu0 0
        %298 = vmatprep.subr.bf16.mxu0 0
        %299 = vmatpush1.bf16.xpose.msra.mxu0 0
        %300 = vmatprep.subr.bf16.mxu0 0
        %301 = vmatpush1.bf16.xpose.msra.mxu0 0
        %302 = vmatprep.subr.bf16.mxu0 0
        %303 = vmatpush1.bf16.xpose.msra.mxu0 0
        %304 = vmatprep.subr.bf16.mxu0 0
        %305 = vmatpush1.bf16.xpose.msra.mxu0 0
        %306 = vmatprep.subr.bf16.mxu0 0
        %307 = vmatpush1.bf16.xpose.msra.mxu0 0
        %308 = vmatprep.subr.bf16.mxu0 0
        %309 = vmatpush1.bf16.xpose.msra.mxu0 0
        %310 = vmatprep.subr.bf16.mxu0 0
        %311 = vmatpush1.bf16.xpose.msra.mxu0 0
        %312 = vmatprep.subr.bf16.mxu0 0
        %313 = vmatpush1.bf16.xpose.msra.mxu0 0
        %314 = vmatprep.subr.bf16.mxu0 0
        %315 = vmatpush1.bf16.xpose.msra.mxu0 0
        %316 = vmatprep.subr.bf16.mxu0 0
        %317 = vmatpush1.bf16.xpose.msra.mxu0 0
        %318 = vmatprep.subr.bf16.mxu0 0
        %319 = vmatpush1.bf16.xpose.msra.mxu0 0
        %320 = vmatprep.subr.bf16.mxu0 0
        %321 = vmatpush1.bf16.xpose.msra.mxu0 0
        %322 = vmatprep.mubr.bf16.mxu0 0
        %323 = vmatmul.mubr.bf16.gmra.mrb[0].mxu0 %v289
        %v324 = vpop.f32.mrb[0].mxu0
        %v325 = vadd.f32 0.0, %v324
        %v326 = vpop.f32.mrb[0].mxu0
        %v327 = vpop.f32.mrb[0].mxu0
        %v328 = vpop.f32.mrb[0].mxu0
        %329 = vdwg.mxu0
        %v330 = vlaneseq
        %v331 = vshrl.u32 %v330, 7
        %v332 = vlaneseq
        %v333 = vand.u32 %v332, 127
        %vm334 = vcmp.le.s32.totalorder %v333, %v331
        %v335 = vsel %vm334, %v325, -inf
        %vm336 = vcmask 64512
        %v337 = vsel %vm336, %v335, -inf
        %338 = vmax.xlane.f32.xlu0 %v337
        %v339 = vpop.xlane.xlu0 %338
        %v340 = vsub.f32 %v335, %v339
        %v341 = vmul.f32 %v340, 1.442695
        %v342 = vpow.pop %v341
        %v343 = vsel %vm336, %v342, 0.0
        %344 = vadd.xlane.f32.xlu0 %v343
        %v345 = vpop.xlane.xlu0 %344
        %v346 = vrcp.pop %v345
        %v347 = vmul.f32 %v342, %v346
        %v348 = vpack.c.bf16 %v347, %v347
        %v350 = vsel %vm336, %v348, 0
        %vm352 = vcmask 1043456
        %v354 = vsel %vm352, %v287, 0
        %356 = vmatprep.subr.bf16.mxu0 0
        %357 = vmatpush1.bf16.msra.mxu0 %v354
        %358 = vmatprep.subr.bf16.mxu0 0
        %359 = vmatpush1.bf16.msra.mxu0 0
        %360 = vmatprep.subr.bf16.mxu0 0
        %361 = vmatpush1.bf16.msra.mxu0 0
        %362 = vmatprep.subr.bf16.mxu0 0
        %363 = vmatpush1.bf16.msra.mxu0 0
        %364 = vmatprep.subr.bf16.mxu0 0
        %365 = vmatpush1.bf16.msra.mxu0 0
        %366 = vmatprep.subr.bf16.mxu0 0
        %367 = vmatpush1.bf16.msra.mxu0 0
        %368 = vmatprep.subr.bf16.mxu0 0
        %369 = vmatpush1.bf16.msra.mxu0 0
        %370 = vmatprep.subr.bf16.mxu0 0
        %371 = vmatpush1.bf16.msra.mxu0 0
        %372 = vmatprep.subr.bf16.mxu0 0
        %373 = vmatpush1.bf16.msra.mxu0 0
        %374 = vmatprep.subr.bf16.mxu0 0
        %375 = vmatpush1.bf16.msra.mxu0 0
        %376 = vmatprep.subr.bf16.mxu0 0
        %377 = vmatpush1.bf16.msra.mxu0 0
        %378 = vmatprep.subr.bf16.mxu0 0
        %379 = vmatpush1.bf16.msra.mxu0 0
        %380 = vmatprep.subr.bf16.mxu0 0
        %381 = vmatpush1.bf16.msra.mxu0 0
        %382 = vmatprep.subr.bf16.mxu0 0
        %383 = vmatpush1.bf16.msra.mxu0 0
        %384 = vmatprep.subr.bf16.mxu0 0
        %385 = vmatpush1.bf16.msra.mxu0 0
        %386 = vmatprep.subr.bf16.mxu0 0
        %387 = vmatpush1.bf16.msra.mxu0 0
        %388 = vmatprep.mubr.bf16.mxu0 0
        %389 = vmatmul.mubr.bf16.gmra.mrb[0].mxu0 %v350
        %v390 = vpop.f32.mrb[0].mxu0
        %v391 = vadd.f32 0.0, %v390
        %v392 = vpop.f32.mrb[0].mxu0
        %v393 = vpop.f32.mrb[0].mxu0
        %v394 = vpop.f32.mrb[0].mxu0
        %395 = vdwg.mxu0
        %396 = vst [vmem:[%s136] sm:$0xff] %v391
        %s397 = sand.u32 %s71, 1
        %s398 = scalar_lea.sflag [#allocation3], %s397
        %s399 = sand.u32 %s71, 1
        %s400 = smul.addr %s399, 8
        %s401 = scalar_lea.vmem [#allocation2], %s400
        // Predicated region
        $region29: #{head_forward.1} parent=27 // pred_check
          %p402 = pneg %p81
        $region30: #{head_forward.1} parent=27 // pred_check_branch
          %404 = sbr.rel (%p402) target = $region32
        $region31: #{head_forward.1} parent=27 // pred_region
          %s406 = ssub.s32 128, 128
          %407 = vsyncadd %s398, %s406
          %s408 = smul.addr %s16, 128
          %s409 = scalar_lea.hbm %s2, %s408
          %s411 = sshll.u32 %s401, 4
          %s412 = int_to_ptr.vmem [resolvable:$true] %s411
          %414 = dma.vmem_to_hbm [thread:$0]  %s412, 128, %s409, %s398
        $region32: #{head_forward.1} parent=27 // pred_fallthru
          _
      $region28: #{head_forward.1} parent=5 // pred_fallthru
        _
      %p415 = scmp.le.s32.totalorder 2, %s11
      // Predicated region
      $region33: #{head_forward.1} parent=5 // pred_check
        %p416 = pneg %p415
      $region34: #{head_forward.1} parent=5 // pred_check_branch
        %418 = sbr.rel (%p416) target = $region36
      $region35: #{head_forward.1} parent=5 // pred_region
        %s419 = ssub.s32 %s11, 2
        // Predicated region
        $region37: #{head_forward.1} parent=35 // pred_check
          %p420 = pneg %p87
        $region38: #{head_forward.1} parent=35 // pred_check_branch
          %422 = sbr.rel (%p420) target = $region40
        $region39: #{head_forward.1} parent=35 // pred_region
          %s423 = sand.u32 %s72, 1
          %s424 = scalar_lea.sflag [#allocation3], %s423
          %s425 = sand.u32 %s72, 1
          %s426 = smul.addr %s425, 8
          %s427 = scalar_lea.vmem [#allocation2], %s426
          %428 = dma.done %s424, 128
        $region40: #{head_forward.1} parent=35 // pred_fallthru
          _
      $region36: #{head_forward.1} parent=5 // pred_fallthru
        _
    $region6: #{head_forward.1} parent=1 // loop_footer
      %s15 = sadd.s32 1, %s11
    $region7: #{head_forward.1} parent=1 // loop_footer_branch
      %10 = sbr.rel target = $region3
    $region8: #{head_forward.1} parent=1 // loop_exit
      _
    %429 = vsyncpa [#allocation3], 1
    %s430 = scalar_lea.sflag [#allocation3], 1
    %431 = vsyncpa %s430, 1

</llo_original>
